<compile_context>
chip_gen: v7x
topology: tpu7x:2x2x1
jax: 0.10.0
libtpu: 0.0.40
codegen_flags: <defaults>
</compile_context>

<pallas_src>
import functools

import jax
import jax.numpy as jnp
from jax.experimental import pallas as pl
from jax.experimental.pallas import tpu as pltpu


# ----------------------------- Pallas kernel -------------------------------

def multi_adapter_kernel(xv_ref, wv_ref, bv_ref, gv_ref, bev_ref,
                         xe_ref, we_ref, be_ref, ge_ref, bee_ref,
                         o_ref, *, num_tokens, cross_dim, eps):
    """Fused MultiAdapterModel forward for one batch tile.

    xv_ref:  (bm, Ev)      vision embeddings
    wv_ref:  (Ev, T*D)     vision linear weight (pre-transposed, in x out)
    bv_ref:  (1, T*D)      vision linear bias
    gv_ref:  (1, D)        vision layernorm gamma
    bev_ref: (1, D)        vision layernorm beta
    xe_ref / we_ref / be_ref / ge_ref / bee_ref: same for the EEG adapter
    o_ref:   (bm, 2*T, D)  [vision tokens ; eeg tokens] along the token axis
    """
    T, D = num_tokens, cross_dim

    def project(x_ref, w_ref, b_ref, g_ref, beta_ref, token_offset):
        # One MXU pass: (bm, E) @ (E, T*D) with fp32 accumulation.
        y = jnp.dot(x_ref[...], w_ref[...],
                    preferred_element_type=jnp.float32) + b_ref[...]
        g = g_ref[...]
        beta = beta_ref[...]
        # Per-token LayerNorm on lane-aligned 128-wide static slices of the
        # matmul result; each token row is stored directly to its output
        # position (no cross-lane relayout of the matmul output).
        for t in range(T):
            tok = y[:, t * D:(t + 1) * D]                       # (bm, D)
            mean = jnp.mean(tok, axis=-1, keepdims=True)
            var = jnp.mean(jnp.square(tok - mean), axis=-1, keepdims=True)
            out = (tok - mean) * jax.lax.rsqrt(var + eps) * g + beta
            o_ref[:, token_offset + t, :] = out.astype(o_ref.dtype)

    project(xv_ref, wv_ref, bv_ref, gv_ref, bev_ref, 0)   # vision tokens
    project(xe_ref, we_ref, be_ref, ge_ref, bee_ref, T)   # eeg tokens


def _pick_batch_tile(B):
    """Largest power-of-two tile (<=512) that evenly divides B."""
    for cand in (512, 256, 128, 64, 32, 16, 8):
        if B % cand == 0:
            return cand
    return B   # tiny / ragged batch: single block covering everything


def multi_adapter_forward(vision_embeds, brain_embeds, vision_params,
                          eeg_params, *, num_tokens, cross_dim, eps=1e-5,
                          out_dtype=jnp.float32):
    """Single fused pallas_call for MultiAdapterModel.forward.

    vision_embeds: (B, Ev) float32
    brain_embeds:  (B, Ee) float32
    *_params: dict with pre-transposed "w_t" (E, T*D), "b" (1, T*D),
              "gamma" (1, D), "beta" (1, D)
    returns: (B, 2*T, D) out_dtype
    """
    B, Ev = vision_embeds.shape
    Be, Ee = brain_embeds.shape
    assert B == Be, (B, Be)
    T, D = num_tokens, cross_dim

    bm = _pick_batch_tile(B)
    grid = (B // bm,)

    kernel = functools.partial(multi_adapter_kernel, num_tokens=T,
                               cross_dim=D, eps=eps)
    vp, ep = vision_params, eeg_params

    return pl.pallas_call(
        kernel,
        out_shape=jax.ShapeDtypeStruct((B, 2 * T, D), out_dtype),
        grid=grid,
        in_specs=[
            pl.BlockSpec((bm, Ev), lambda i: (i, 0)),
            pl.BlockSpec((Ev, T * D), lambda i: (0, 0)),
            pl.BlockSpec((1, T * D), lambda i: (0, 0)),
            pl.BlockSpec((1, D), lambda i: (0, 0)),
            pl.BlockSpec((1, D), lambda i: (0, 0)),
            pl.BlockSpec((bm, Ee), lambda i: (i, 0)),
            pl.BlockSpec((Ee, T * D), lambda i: (0, 0)),
            pl.BlockSpec((1, T * D), lambda i: (0, 0)),
            pl.BlockSpec((1, D), lambda i: (0, 0)),
            pl.BlockSpec((1, D), lambda i: (0, 0)),
        ],
        out_specs=pl.BlockSpec((bm, 2 * T, D), lambda i: (i, 0, 0)),
        compiler_params=pltpu.CompilerParams(
            dimension_semantics=("parallel",)),
    )(vision_embeds, vp["w_t"], vp["b"], vp["gamma"], vp["beta"],
      brain_embeds, ep["w_t"], ep["b"], ep["gamma"], ep["beta"])


# --------------------------- MultiAdapterModel ------------------------------

class MultiAdapterModelPallas:
    """JAX/Pallas re-implementation of MultiAdapterModel.forward."""

    def __init__(self, key, *, vision_embed_dim, eeg_embed_dim, num_tokens,
                 cross_attention_dim):
        self.num_tokens = num_tokens
        self.cross_dim = cross_attention_dim
        kv, ke = jax.random.split(key)

        def init_proj(k, embed_dim):
            # nn.Linear weight (out=T*D, in=E); _init_weights zeroes the bias
            # and sets LayerNorm weight=1, bias=0.
            w = 0.02 * jax.random.normal(
                k, (num_tokens * cross_attention_dim, embed_dim),
                dtype=jnp.float32)
            return {
                "w": w,                       # PyTorch layout (for reference)
                "w_t": jnp.asarray(w.T),      # pre-transposed, MXU-ready
                "b": jnp.zeros((1, num_tokens * cross_attention_dim),
                               jnp.float32),
                "gamma": jnp.ones((1, cross_attention_dim), jnp.float32),
                "beta": jnp.zeros((1, cross_attention_dim), jnp.float32),
            }

        self.vision_proj = init_proj(kv, vision_embed_dim)
        self.eeg_proj = init_proj(ke, eeg_embed_dim)

    def __call__(self, vision_embeds, brain_embeds):
        # Fused: vision projection + eeg projection + torch.cat(dim=1).
        return multi_adapter_forward(
            vision_embeds, brain_embeds, self.vision_proj, self.eeg_proj,
            num_tokens=self.num_tokens, cross_dim=self.cross_dim)


# ------------------------------ reference -----------------------------------

def adapter_projection_ref(x, w, b, gamma, beta, num_tokens, cross_dim,
                           eps=1e-5):
    B = x.shape[0]
    y = (x @ w.T + b).reshape(B, num_tokens, cross_dim)
    mean = y.mean(-1, keepdims=True)
    var = ((y - mean) ** 2).mean(-1, keepdims=True)
    return (y - mean) / jnp.sqrt(var + eps) * gamma + beta


# --------------------------------- main --------------------------------------

if __name__ == "__main__":
    B = 2
    VISION_EMBED = 32
    EEG_EMBED = 16
    NUM_TOKENS = 4
    CROSS_DIM = 128

    key = jax.random.PRNGKey(0)
    k_model, k_vis, k_eeg = jax.random.split(key, 3)

    model = MultiAdapterModelPallas(
        k_model,
        vision_embed_dim=VISION_EMBED,
        eeg_embed_dim=EEG_EMBED,
        num_tokens=NUM_TOKENS,
        cross_attention_dim=CROSS_DIM,
    )

    vision_embeds = jax.random.normal(k_vis, (B, VISION_EMBED), jnp.float32)
    brain_embeds = jax.random.normal(k_eeg, (B, EEG_EMBED), jnp.float32)

    out = model(vision_embeds, brain_embeds)
    out = jax.block_until_ready(out)
    assert out.shape == (B, 2 * NUM_TOKENS, CROSS_DIM), out.shape

    # Cross-check against a pure-JAX reference (matches the PyTorch forward).
    vp, ep = model.vision_proj, model.eeg_proj
    ref = jnp.concatenate(
        [adapter_projection_ref(vision_embeds, vp["w"], vp["b"], vp["gamma"],
                                vp["beta"], NUM_TOKENS, CROSS_DIM),
         adapter_projection_ref(brain_embeds, ep["w"], ep["b"], ep["gamma"],
                                ep["beta"], NUM_TOKENS, CROSS_DIM)],
        axis=1)
    assert jnp.allclose(out, ref, atol=1e-4, rtol=1e-4), \
        float(jnp.max(jnp.abs(out - ref)))

    print("KERNEL_OK")
</pallas_src>

<mosaic_0001>
module attributes {stable_mosaic.version = 11 : i64} {
  func.func @multi_adapter_kernel(%arg0: i32, %arg1: memref<2x32xf32, #tpu.memory_space<vmem>>, %arg2: memref<32x512xf32, #tpu.memory_space<vmem>>, %arg3: memref<1x512xf32, #tpu.memory_space<vmem>>, %arg4: memref<1x128xf32, #tpu.memory_space<vmem>>, %arg5: memref<1x128xf32, #tpu.memory_space<vmem>>, %arg6: memref<2x16xf32, #tpu.memory_space<vmem>>, %arg7: memref<16x512xf32, #tpu.memory_space<vmem>>, %arg8: memref<1x512xf32, #tpu.memory_space<vmem>>, %arg9: memref<1x128xf32, #tpu.memory_space<vmem>>, %arg10: memref<1x128xf32, #tpu.memory_space<vmem>>, %arg11: memref<2x8x128xf32, #tpu.memory_space<vmem>>) attributes {dimension_semantics = [#tpu.dimension_semantics<parallel>], iteration_bounds = array<i64: 1>, scalar_prefetch = 0 : i64, scratch_operands = 0 : i64, tpu.core_type = #tpu.core_type<tc>, window_params = [{transform_indices = @transform_0, window_bounds = array<i64: 2, 32>}, {pipeline_mode = #tpu.pipeline_mode<synchronous>, transform_indices = @transform_1, window_bounds = array<i64: 32, 512>}, {pipeline_mode = #tpu.pipeline_mode<synchronous>, transform_indices = @transform_2, window_bounds = array<i64: 1, 512>}, {pipeline_mode = #tpu.pipeline_mode<synchronous>, transform_indices = @transform_3, window_bounds = array<i64: 1, 128>}, {pipeline_mode = #tpu.pipeline_mode<synchronous>, transform_indices = @transform_4, window_bounds = array<i64: 1, 128>}, {transform_indices = @transform_5, window_bounds = array<i64: 2, 16>}, {pipeline_mode = #tpu.pipeline_mode<synchronous>, transform_indices = @transform_6, window_bounds = array<i64: 16, 512>}, {pipeline_mode = #tpu.pipeline_mode<synchronous>, transform_indices = @transform_7, window_bounds = array<i64: 1, 512>}, {pipeline_mode = #tpu.pipeline_mode<synchronous>, transform_indices = @transform_8, window_bounds = array<i64: 1, 128>}, {pipeline_mode = #tpu.pipeline_mode<synchronous>, transform_indices = @transform_9, window_bounds = array<i64: 1, 128>}, {transform_indices = @transform_10, window_bounds = array<i64: 2, 8, 128>}]} {
    %c0 = arith.constant 0 : index
    %c0_0 = arith.constant 0 : index
    %0 = vector.load %arg1[%c0, %c0_0] : memref<2x32xf32, #tpu.memory_space<vmem>>, vector<2x32xf32>
    %c0_1 = arith.constant 0 : index
    %c0_2 = arith.constant 0 : index
    %1 = vector.load %arg2[%c0_1, %c0_2] : memref<32x512xf32, #tpu.memory_space<vmem>>, vector<32x512xf32>
    %cst = arith.constant dense<0.000000e+00> : vector<2x512xf32>
    %2 = tpu.matmul %0, %1, %cst {dimension_numbers = #tpu.dot_dimension_numbers<[1], [0], [0], [1], [0, 0, 1, 1], [], []>} : vector<2x32xf32>, vector<32x512xf32>, vector<2x512xf32> -> vector<2x512xf32>
    %c0_3 = arith.constant 0 : index
    %c0_4 = arith.constant 0 : index
    %3 = vector.load %arg3[%c0_3, %c0_4] : memref<1x512xf32, #tpu.memory_space<vmem>>, vector<1x512xf32>
    %4 = vector.broadcast %3 : vector<1x512xf32> to vector<2x512xf32>
    %5 = arith.addf %2, %4 : vector<2x512xf32>
    %c0_5 = arith.constant 0 : index
    %c0_6 = arith.constant 0 : index
    %6 = vector.load %arg4[%c0_5, %c0_6] : memref<1x128xf32, #tpu.memory_space<vmem>>, vector<1x128xf32>
    %c0_7 = arith.constant 0 : index
    %c0_8 = arith.constant 0 : index
    %7 = vector.load %arg5[%c0_7, %c0_8] : memref<1x128xf32, #tpu.memory_space<vmem>>, vector<1x128xf32>
    %8 = vector.extract_strided_slice %5 {offsets = [0, 0], sizes = [2, 128], strides = [1, 1]} : vector<2x512xf32> to vector<2x128xf32>
    %cst_9 = arith.constant dense<0.000000e+00> : vector<2xf32>
    %9 = vector.multi_reduction <add>, %8, %cst_9 [1] : vector<2x128xf32> to vector<2xf32>
    %10 = vector.shape_cast %9 : vector<2xf32> to vector<2x1xf32>
    %cst_10 = arith.constant 1.280000e+02 : f32
    %11 = vector.broadcast %cst_10 : f32 to vector<2x1xf32>
    %12 = arith.divf %10, %11 : vector<2x1xf32>
    %13 = vector.broadcast %12 : vector<2x1xf32> to vector<2x128xf32>
    %14 = arith.subf %8, %13 : vector<2x128xf32>
    %15 = arith.mulf %14, %14 : vector<2x128xf32>
    %cst_11 = arith.constant dense<0.000000e+00> : vector<2xf32>
    %16 = vector.multi_reduction <add>, %15, %cst_11 [1] : vector<2x128xf32> to vector<2xf32>
    %17 = vector.shape_cast %16 : vector<2xf32> to vector<2x1xf32>
    %cst_12 = arith.constant 1.280000e+02 : f32
    %18 = vector.broadcast %cst_12 : f32 to vector<2x1xf32>
    %19 = arith.divf %17, %18 : vector<2x1xf32>
    %20 = vector.broadcast %12 : vector<2x1xf32> to vector<2x128xf32>
    %21 = arith.subf %8, %20 : vector<2x128xf32>
    %cst_13 = arith.constant 9.99999974E-6 : f32
    %22 = vector.broadcast %cst_13 : f32 to vector<2x1xf32>
    %23 = arith.addf %19, %22 : vector<2x1xf32>
    %24 = math.rsqrt %23 : vector<2x1xf32>
    %25 = vector.broadcast %24 : vector<2x1xf32> to vector<2x128xf32>
    %26 = arith.mulf %21, %25 : vector<2x128xf32>
    %27 = vector.broadcast %6 : vector<1x128xf32> to vector<2x128xf32>
    %28 = arith.mulf %26, %27 : vector<2x128xf32>
    %29 = vector.broadcast %7 : vector<1x128xf32> to vector<2x128xf32>
    %30 = arith.addf %28, %29 : vector<2x128xf32>
    %c0_14 = arith.constant 0 : index
    %c0_15 = arith.constant 0 : index
    %c0_16 = arith.constant 0 : index
    %31 = vector.load %arg11[%c0_14, %c0_15, %c0_16] : memref<2x8x128xf32, #tpu.memory_space<vmem>>, vector<2x1x128xf32>
    %32 = vector.shape_cast %31 : vector<2x1x128xf32> to vector<2x128xf32>
    %33 = vector.shape_cast %30 : vector<2x128xf32> to vector<2x1x128xf32>
    tpu.vector_store %arg11[%c0_14, %c0_15, %c0_16], %33 {strides = array<i32>} : memref<2x8x128xf32, #tpu.memory_space<vmem>>, vector<2x1x128xf32>,
    %34 = vector.extract_strided_slice %5 {offsets = [0, 128], sizes = [2, 128], strides = [1, 1]} : vector<2x512xf32> to vector<2x128xf32>
    %cst_17 = arith.constant dense<0.000000e+00> : vector<2xf32>
    %35 = vector.multi_reduction <add>, %34, %cst_17 [1] : vector<2x128xf32> to vector<2xf32>
    %36 = vector.shape_cast %35 : vector<2xf32> to vector<2x1xf32>
    %cst_18 = arith.constant 1.280000e+02 : f32
    %37 = vector.broadcast %cst_18 : f32 to vector<2x1xf32>
    %38 = arith.divf %36, %37 : vector<2x1xf32>
    %39 = vector.broadcast %38 : vector<2x1xf32> to vector<2x128xf32>
    %40 = arith.subf %34, %39 : vector<2x128xf32>
    %41 = arith.mulf %40, %40 : vector<2x128xf32>
    %cst_19 = arith.constant dense<0.000000e+00> : vector<2xf32>
    %42 = vector.multi_reduction <add>, %41, %cst_19 [1] : vector<2x128xf32> to vector<2xf32>
    %43 = vector.shape_cast %42 : vector<2xf32> to vector<2x1xf32>
    %cst_20 = arith.constant 1.280000e+02 : f32
    %44 = vector.broadcast %cst_20 : f32 to vector<2x1xf32>
    %45 = arith.divf %43, %44 : vector<2x1xf32>
    %46 = vector.broadcast %38 : vector<2x1xf32> to vector<2x128xf32>
    %47 = arith.subf %34, %46 : vector<2x128xf32>
    %cst_21 = arith.constant 9.99999974E-6 : f32
    %48 = vector.broadcast %cst_21 : f32 to vector<2x1xf32>
    %49 = arith.addf %45, %48 : vector<2x1xf32>
    %50 = math.rsqrt %49 : vector<2x1xf32>
    %51 = vector.broadcast %50 : vector<2x1xf32> to vector<2x128xf32>
    %52 = arith.mulf %47, %51 : vector<2x128xf32>
    %53 = vector.broadcast %6 : vector<1x128xf32> to vector<2x128xf32>
    %54 = arith.mulf %52, %53 : vector<2x128xf32>
    %55 = vector.broadcast %7 : vector<1x128xf32> to vector<2x128xf32>
    %56 = arith.addf %54, %55 : vector<2x128xf32>
    %c0_22 = arith.constant 0 : index
    %c1 = arith.constant 1 : index
    %c0_23 = arith.constant 0 : index
    %57 = vector.load %arg11[%c0_22, %c1, %c0_23] : memref<2x8x128xf32, #tpu.memory_space<vmem>>, vector<2x1x128xf32>
    %58 = vector.shape_cast %57 : vector<2x1x128xf32> to vector<2x128xf32>
    %59 = vector.shape_cast %56 : vector<2x128xf32> to vector<2x1x128xf32>
    tpu.vector_store %arg11[%c0_22, %c1, %c0_23], %59 {strides = array<i32>} : memref<2x8x128xf32, #tpu.memory_space<vmem>>, vector<2x1x128xf32>,
    %60 = vector.extract_strided_slice %5 {offsets = [0, 256], sizes = [2, 128], strides = [1, 1]} : vector<2x512xf32> to vector<2x128xf32>
    %cst_24 = arith.constant dense<0.000000e+00> : vector<2xf32>
    %61 = vector.multi_reduction <add>, %60, %cst_24 [1] : vector<2x128xf32> to vector<2xf32>
    %62 = vector.shape_cast %61 : vector<2xf32> to vector<2x1xf32>
    %cst_25 = arith.constant 1.280000e+02 : f32
    %63 = vector.broadcast %cst_25 : f32 to vector<2x1xf32>
    %64 = arith.divf %62, %63 : vector<2x1xf32>
    %65 = vector.broadcast %64 : vector<2x1xf32> to vector<2x128xf32>
    %66 = arith.subf %60, %65 : vector<2x128xf32>
    %67 = arith.mulf %66, %66 : vector<2x128xf32>
    %cst_26 = arith.constant dense<0.000000e+00> : vector<2xf32>
    %68 = vector.multi_reduction <add>, %67, %cst_26 [1] : vector<2x128xf32> to vector<2xf32>
    %69 = vector.shape_cast %68 : vector<2xf32> to vector<2x1xf32>
    %cst_27 = arith.constant 1.280000e+02 : f32
    %70 = vector.broadcast %cst_27 : f32 to vector<2x1xf32>
    %71 = arith.divf %69, %70 : vector<2x1xf32>
    %72 = vector.broadcast %64 : vector<2x1xf32> to vector<2x128xf32>
    %73 = arith.subf %60, %72 : vector<2x128xf32>
    %cst_28 = arith.constant 9.99999974E-6 : f32
    %74 = vector.broadcast %cst_28 : f32 to vector<2x1xf32>
    %75 = arith.addf %71, %74 : vector<2x1xf32>
    %76 = math.rsqrt %75 : vector<2x1xf32>
    %77 = vector.broadcast %76 : vector<2x1xf32> to vector<2x128xf32>
    %78 = arith.mulf %73, %77 : vector<2x128xf32>
    %79 = vector.broadcast %6 : vector<1x128xf32> to vector<2x128xf32>
    %80 = arith.mulf %78, %79 : vector<2x128xf32>
    %81 = vector.broadcast %7 : vector<1x128xf32> to vector<2x128xf32>
    %82 = arith.addf %80, %81 : vector<2x128xf32>
    %c0_29 = arith.constant 0 : index
    %c2 = arith.constant 2 : index
    %c0_30 = arith.constant 0 : index
    %83 = vector.load %arg11[%c0_29, %c2, %c0_30] : memref<2x8x128xf32, #tpu.memory_space<vmem>>, vector<2x1x128xf32>
    %84 = vector.shape_cast %83 : vector<2x1x128xf32> to vector<2x128xf32>
    %85 = vector.shape_cast %82 : vector<2x128xf32> to vector<2x1x128xf32>
    tpu.vector_store %arg11[%c0_29, %c2, %c0_30], %85 {strides = array<i32>} : memref<2x8x128xf32, #tpu.memory_space<vmem>>, vector<2x1x128xf32>,
    %86 = vector.extract_strided_slice %5 {offsets = [0, 384], sizes = [2, 128], strides = [1, 1]} : vector<2x512xf32> to vector<2x128xf32>
    %cst_31 = arith.constant dense<0.000000e+00> : vector<2xf32>
    %87 = vector.multi_reduction <add>, %86, %cst_31 [1] : vector<2x128xf32> to vector<2xf32>
    %88 = vector.shape_cast %87 : vector<2xf32> to vector<2x1xf32>
    %cst_32 = arith.constant 1.280000e+02 : f32
    %89 = vector.broadcast %cst_32 : f32 to vector<2x1xf32>
    %90 = arith.divf %88, %89 : vector<2x1xf32>
    %91 = vector.broadcast %90 : vector<2x1xf32> to vector<2x128xf32>
    %92 = arith.subf %86, %91 : vector<2x128xf32>
    %93 = arith.mulf %92, %92 : vector<2x128xf32>
    %cst_33 = arith.constant dense<0.000000e+00> : vector<2xf32>
    %94 = vector.multi_reduction <add>, %93, %cst_33 [1] : vector<2x128xf32> to vector<2xf32>
    %95 = vector.shape_cast %94 : vector<2xf32> to vector<2x1xf32>
    %cst_34 = arith.constant 1.280000e+02 : f32
    %96 = vector.broadcast %cst_34 : f32 to vector<2x1xf32>
    %97 = arith.divf %95, %96 : vector<2x1xf32>
    %98 = vector.broadcast %90 : vector<2x1xf32> to vector<2x128xf32>
    %99 = arith.subf %86, %98 : vector<2x128xf32>
    %cst_35 = arith.constant 9.99999974E-6 : f32
    %100 = vector.broadcast %cst_35 : f32 to vector<2x1xf32>
    %101 = arith.addf %97, %100 : vector<2x1xf32>
    %102 = math.rsqrt %101 : vector<2x1xf32>
    %103 = vector.broadcast %102 : vector<2x1xf32> to vector<2x128xf32>
    %104 = arith.mulf %99, %103 : vector<2x128xf32>
    %105 = vector.broadcast %6 : vector<1x128xf32> to vector<2x128xf32>
    %106 = arith.mulf %104, %105 : vector<2x128xf32>
    %107 = vector.broadcast %7 : vector<1x128xf32> to vector<2x128xf32>
    %108 = arith.addf %106, %107 : vector<2x128xf32>
    %c0_36 = arith.constant 0 : index
    %c3 = arith.constant 3 : index
    %c0_37 = arith.constant 0 : index
    %109 = vector.load %arg11[%c0_36, %c3, %c0_37] : memref<2x8x128xf32, #tpu.memory_space<vmem>>, vector<2x1x128xf32>
    %110 = vector.shape_cast %109 : vector<2x1x128xf32> to vector<2x128xf32>
    %111 = vector.shape_cast %108 : vector<2x128xf32> to vector<2x1x128xf32>
    tpu.vector_store %arg11[%c0_36, %c3, %c0_37], %111 {strides = array<i32>} : memref<2x8x128xf32, #tpu.memory_space<vmem>>, vector<2x1x128xf32>,
    %c0_38 = arith.constant 0 : index
    %c0_39 = arith.constant 0 : index
    %112 = vector.load %arg6[%c0_38, %c0_39] : memref<2x16xf32, #tpu.memory_space<vmem>>, vector<2x16xf32>
    %c0_40 = arith.constant 0 : index
    %c0_41 = arith.constant 0 : index
    %113 = vector.load %arg7[%c0_40, %c0_41] : memref<16x512xf32, #tpu.memory_space<vmem>>, vector<16x512xf32>
    %cst_42 = arith.constant dense<0.000000e+00> : vector<2x512xf32>
    %114 = tpu.matmul %112, %113, %cst_42 {dimension_numbers = #tpu.dot_dimension_numbers<[1], [0], [0], [1], [0, 0, 1, 1], [], []>} : vector<2x16xf32>, vector<16x512xf32>, vector<2x512xf32> -> vector<2x512xf32>
    %c0_43 = arith.constant 0 : index
    %c0_44 = arith.constant 0 : index
    %115 = vector.load %arg8[%c0_43, %c0_44] : memref<1x512xf32, #tpu.memory_space<vmem>>, vector<1x512xf32>
    %116 = vector.broadcast %115 : vector<1x512xf32> to vector<2x512xf32>
    %117 = arith.addf %114, %116 : vector<2x512xf32>
    %c0_45 = arith.constant 0 : index
    %c0_46 = arith.constant 0 : index
    %118 = vector.load %arg9[%c0_45, %c0_46] : memref<1x128xf32, #tpu.memory_space<vmem>>, vector<1x128xf32>
    %c0_47 = arith.constant 0 : index
    %c0_48 = arith.constant 0 : index
    %119 = vector.load %arg10[%c0_47, %c0_48] : memref<1x128xf32, #tpu.memory_space<vmem>>, vector<1x128xf32>
    %120 = vector.extract_strided_slice %117 {offsets = [0, 0], sizes = [2, 128], strides = [1, 1]} : vector<2x512xf32> to vector<2x128xf32>
    %cst_49 = arith.constant dense<0.000000e+00> : vector<2xf32>
    %121 = vector.multi_reduction <add>, %120, %cst_49 [1] : vector<2x128xf32> to vector<2xf32>
    %122 = vector.shape_cast %121 : vector<2xf32> to vector<2x1xf32>
    %cst_50 = arith.constant 1.280000e+02 : f32
    %123 = vector.broadcast %cst_50 : f32 to vector<2x1xf32>
    %124 = arith.divf %122, %123 : vector<2x1xf32>
    %125 = vector.broadcast %124 : vector<2x1xf32> to vector<2x128xf32>
    %126 = arith.subf %120, %125 : vector<2x128xf32>
    %127 = arith.mulf %126, %126 : vector<2x128xf32>
    %cst_51 = arith.constant dense<0.000000e+00> : vector<2xf32>
    %128 = vector.multi_reduction <add>, %127, %cst_51 [1] : vector<2x128xf32> to vector<2xf32>
    %129 = vector.shape_cast %128 : vector<2xf32> to vector<2x1xf32>
    %cst_52 = arith.constant 1.280000e+02 : f32
    %130 = vector.broadcast %cst_52 : f32 to vector<2x1xf32>
    %131 = arith.divf %129, %130 : vector<2x1xf32>
    %132 = vector.broadcast %124 : vector<2x1xf32> to vector<2x128xf32>
    %133 = arith.subf %120, %132 : vector<2x128xf32>
    %cst_53 = arith.constant 9.99999974E-6 : f32
    %134 = vector.broadcast %cst_53 : f32 to vector<2x1xf32>
    %135 = arith.addf %131, %134 : vector<2x1xf32>
    %136 = math.rsqrt %135 : vector<2x1xf32>
    %137 = vector.broadcast %136 : vector<2x1xf32> to vector<2x128xf32>
    %138 = arith.mulf %133, %137 : vector<2x128xf32>
    %139 = vector.broadcast %118 : vector<1x128xf32> to vector<2x128xf32>
    %140 = arith.mulf %138, %139 : vector<2x128xf32>
    %141 = vector.broadcast %119 : vector<1x128xf32> to vector<2x128xf32>
    %142 = arith.addf %140, %141 : vector<2x128xf32>
    %c0_54 = arith.constant 0 : index
    %c4 = arith.constant 4 : index
    %c0_55 = arith.constant 0 : index
    %143 = vector.load %arg11[%c0_54, %c4, %c0_55] : memref<2x8x128xf32, #tpu.memory_space<vmem>>, vector<2x1x128xf32>
    %144 = vector.shape_cast %143 : vector<2x1x128xf32> to vector<2x128xf32>
    %145 = vector.shape_cast %142 : vector<2x128xf32> to vector<2x1x128xf32>
    tpu.vector_store %arg11[%c0_54, %c4, %c0_55], %145 {strides = array<i32>} : memref<2x8x128xf32, #tpu.memory_space<vmem>>, vector<2x1x128xf32>,
    %146 = vector.extract_strided_slice %117 {offsets = [0, 128], sizes = [2, 128], strides = [1, 1]} : vector<2x512xf32> to vector<2x128xf32>
    %cst_56 = arith.constant dense<0.000000e+00> : vector<2xf32>
    %147 = vector.multi_reduction <add>, %146, %cst_56 [1] : vector<2x128xf32> to vector<2xf32>
    %148 = vector.shape_cast %147 : vector<2xf32> to vector<2x1xf32>
    %cst_57 = arith.constant 1.280000e+02 : f32
    %149 = vector.broadcast %cst_57 : f32 to vector<2x1xf32>
    %150 = arith.divf %148, %149 : vector<2x1xf32>
    %151 = vector.broadcast %150 : vector<2x1xf32> to vector<2x128xf32>
    %152 = arith.subf %146, %151 : vector<2x128xf32>
    %153 = arith.mulf %152, %152 : vector<2x128xf32>
    %cst_58 = arith.constant dense<0.000000e+00> : vector<2xf32>
    %154 = vector.multi_reduction <add>, %153, %cst_58 [1] : vector<2x128xf32> to vector<2xf32>
    %155 = vector.shape_cast %154 : vector<2xf32> to vector<2x1xf32>
    %cst_59 = arith.constant 1.280000e+02 : f32
    %156 = vector.broadcast %cst_59 : f32 to vector<2x1xf32>
    %157 = arith.divf %155, %156 : vector<2x1xf32>
    %158 = vector.broadcast %150 : vector<2x1xf32> to vector<2x128xf32>
    %159 = arith.subf %146, %158 : vector<2x128xf32>
    %cst_60 = arith.constant 9.99999974E-6 : f32
    %160 = vector.broadcast %cst_60 : f32 to vector<2x1xf32>
    %161 = arith.addf %157, %160 : vector<2x1xf32>
    %162 = math.rsqrt %161 : vector<2x1xf32>
    %163 = vector.broadcast %162 : vector<2x1xf32> to vector<2x128xf32>
    %164 = arith.mulf %159, %163 : vector<2x128xf32>
    %165 = vector.broadcast %118 : vector<1x128xf32> to vector<2x128xf32>
    %166 = arith.mulf %164, %165 : vector<2x128xf32>
    %167 = vector.broadcast %119 : vector<1x128xf32> to vector<2x128xf32>
    %168 = arith.addf %166, %167 : vector<2x128xf32>
    %c0_61 = arith.constant 0 : index
    %c5 = arith.constant 5 : index
    %c0_62 = arith.constant 0 : index
    %169 = vector.load %arg11[%c0_61, %c5, %c0_62] : memref<2x8x128xf32, #tpu.memory_space<vmem>>, vector<2x1x128xf32>
    %170 = vector.shape_cast %169 : vector<2x1x128xf32> to vector<2x128xf32>
    %171 = vector.shape_cast %168 : vector<2x128xf32> to vector<2x1x128xf32>
    tpu.vector_store %arg11[%c0_61, %c5, %c0_62], %171 {strides = array<i32>} : memref<2x8x128xf32, #tpu.memory_space<vmem>>, vector<2x1x128xf32>,
    %172 = vector.extract_strided_slice %117 {offsets = [0, 256], sizes = [2, 128], strides = [1, 1]} : vector<2x512xf32> to vector<2x128xf32>
    %cst_63 = arith.constant dense<0.000000e+00> : vector<2xf32>
    %173 = vector.multi_reduction <add>, %172, %cst_63 [1] : vector<2x128xf32> to vector<2xf32>
    %174 = vector.shape_cast %173 : vector<2xf32> to vector<2x1xf32>
    %cst_64 = arith.constant 1.280000e+02 : f32
    %175 = vector.broadcast %cst_64 : f32 to vector<2x1xf32>
    %176 = arith.divf %174, %175 : vector<2x1xf32>
    %177 = vector.broadcast %176 : vector<2x1xf32> to vector<2x128xf32>
    %178 = arith.subf %172, %177 : vector<2x128xf32>
    %179 = arith.mulf %178, %178 : vector<2x128xf32>
    %cst_65 = arith.constant dense<0.000000e+00> : vector<2xf32>
    %180 = vector.multi_reduction <add>, %179, %cst_65 [1] : vector<2x128xf32> to vector<2xf32>
    %181 = vector.shape_cast %180 : vector<2xf32> to vector<2x1xf32>
    %cst_66 = arith.constant 1.280000e+02 : f32
    %182 = vector.broadcast %cst_66 : f32 to vector<2x1xf32>
    %183 = arith.divf %181, %182 : vector<2x1xf32>
    %184 = vector.broadcast %176 : vector<2x1xf32> to vector<2x128xf32>
    %185 = arith.subf %172, %184 : vector<2x128xf32>
    %cst_67 = arith.constant 9.99999974E-6 : f32
    %186 = vector.broadcast %cst_67 : f32 to vector<2x1xf32>
    %187 = arith.addf %183, %186 : vector<2x1xf32>
    %188 = math.rsqrt %187 : vector<2x1xf32>
    %189 = vector.broadcast %188 : vector<2x1xf32> to vector<2x128xf32>
    %190 = arith.mulf %185, %189 : vector<2x128xf32>
    %191 = vector.broadcast %118 : vector<1x128xf32> to vector<2x128xf32>
    %192 = arith.mulf %190, %191 : vector<2x128xf32>
    %193 = vector.broadcast %119 : vector<1x128xf32> to vector<2x128xf32>
    %194 = arith.addf %192, %193 : vector<2x128xf32>
    %c0_68 = arith.constant 0 : index
    %c6 = arith.constant 6 : index
    %c0_69 = arith.constant 0 : index
    %195 = vector.load %arg11[%c0_68, %c6, %c0_69] : memref<2x8x128xf32, #tpu.memory_space<vmem>>, vector<2x1x128xf32>
    %196 = vector.shape_cast %195 : vector<2x1x128xf32> to vector<2x128xf32>
    %197 = vector.shape_cast %194 : vector<2x128xf32> to vector<2x1x128xf32>
    tpu.vector_store %arg11[%c0_68, %c6, %c0_69], %197 {strides = array<i32>} : memref<2x8x128xf32, #tpu.memory_space<vmem>>, vector<2x1x128xf32>,
    %198 = vector.extract_strided_slice %117 {offsets = [0, 384], sizes = [2, 128], strides = [1, 1]} : vector<2x512xf32> to vector<2x128xf32>
    %cst_70 = arith.constant dense<0.000000e+00> : vector<2xf32>
    %199 = vector.multi_reduction <add>, %198, %cst_70 [1] : vector<2x128xf32> to vector<2xf32>
    %200 = vector.shape_cast %199 : vector<2xf32> to vector<2x1xf32>
    %cst_71 = arith.constant 1.280000e+02 : f32
    %201 = vector.broadcast %cst_71 : f32 to vector<2x1xf32>
    %202 = arith.divf %200, %201 : vector<2x1xf32>
    %203 = vector.broadcast %202 : vector<2x1xf32> to vector<2x128xf32>
    %204 = arith.subf %198, %203 : vector<2x128xf32>
    %205 = arith.mulf %204, %204 : vector<2x128xf32>
    %cst_72 = arith.constant dense<0.000000e+00> : vector<2xf32>
    %206 = vector.multi_reduction <add>, %205, %cst_72 [1] : vector<2x128xf32> to vector<2xf32>
    %207 = vector.shape_cast %206 : vector<2xf32> to vector<2x1xf32>
    %cst_73 = arith.constant 1.280000e+02 : f32
    %208 = vector.broadcast %cst_73 : f32 to vector<2x1xf32>
    %209 = arith.divf %207, %208 : vector<2x1xf32>
    %210 = vector.broadcast %202 : vector<2x1xf32> to vector<2x128xf32>
    %211 = arith.subf %198, %210 : vector<2x128xf32>
    %cst_74 = arith.constant 9.99999974E-6 : f32
    %212 = vector.broadcast %cst_74 : f32 to vector<2x1xf32>
    %213 = arith.addf %209, %212 : vector<2x1xf32>
    %214 = math.rsqrt %213 : vector<2x1xf32>
    %215 = vector.broadcast %214 : vector<2x1xf32> to vector<2x128xf32>
    %216 = arith.mulf %211, %215 : vector<2x128xf32>
    %217 = vector.broadcast %118 : vector<1x128xf32> to vector<2x128xf32>
    %218 = arith.mulf %216, %217 : vector<2x128xf32>
    %219 = vector.broadcast %119 : vector<1x128xf32> to vector<2x128xf32>
    %220 = arith.addf %218, %219 : vector<2x128xf32>
    %c0_75 = arith.constant 0 : index
    %c7 = arith.constant 7 : index
    %c0_76 = arith.constant 0 : index
    %221 = vector.load %arg11[%c0_75, %c7, %c0_76] : memref<2x8x128xf32, #tpu.memory_space<vmem>>, vector<2x1x128xf32>
    %222 = vector.shape_cast %221 : vector<2x1x128xf32> to vector<2x128xf32>
    %223 = vector.shape_cast %220 : vector<2x128xf32> to vector<2x1x128xf32>
    tpu.vector_store %arg11[%c0_75, %c7, %c0_76], %223 {strides = array<i32>} : memref<2x8x128xf32, #tpu.memory_space<vmem>>, vector<2x1x128xf32>,
    return
  }
  func.func @transform_0(%arg0: i32) -> (i32, i32) {
    %c0_i32 = arith.constant 0 : i32
    %c0_i32_0 = arith.constant 0 : i32
    return %arg0, %c0_i32 : i32, i32
  }
  func.func @transform_1(%arg0: i32) -> (i32, i32) {
    %c0_i32 = arith.constant 0 : i32
    %c0_i32_0 = arith.constant 0 : i32
    %c0_i32_1 = arith.constant 0 : i32
    return %c0_i32, %c0_i32_0 : i32, i32
  }
  func.func @transform_2(%arg0: i32) -> (i32, i32) {
    %c0_i32 = arith.constant 0 : i32
    %c0_i32_0 = arith.constant 0 : i32
    %c0_i32_1 = arith.constant 0 : i32
    return %c0_i32, %c0_i32_0 : i32, i32
  }
  func.func @transform_3(%arg0: i32) -> (i32, i32) {
    %c0_i32 = arith.constant 0 : i32
    %c0_i32_0 = arith.constant 0 : i32
    %c0_i32_1 = arith.constant 0 : i32
    return %c0_i32, %c0_i32_0 : i32, i32
  }
  func.func @transform_4(%arg0: i32) -> (i32, i32) {
    %c0_i32 = arith.constant 0 : i32
    %c0_i32_0 = arith.constant 0 : i32
    %c0_i32_1 = arith.constant 0 : i32
    return %c0_i32, %c0_i32_0 : i32, i32
  }
  func.func @transform_5(%arg0: i32) -> (i32, i32) {
    %c0_i32 = arith.constant 0 : i32
    %c0_i32_0 = arith.constant 0 : i32
    return %arg0, %c0_i32 : i32, i32
  }
  func.func @transform_6(%arg0: i32) -> (i32, i32) {
    %c0_i32 = arith.constant 0 : i32
    %c0_i32_0 = arith.constant 0 : i32
    %c0_i32_1 = arith.constant 0 : i32
    return %c0_i32, %c0_i32_0 : i32, i32
  }
  func.func @transform_7(%arg0: i32) -> (i32, i32) {
    %c0_i32 = arith.constant 0 : i32
    %c0_i32_0 = arith.constant 0 : i32
    %c0_i32_1 = arith.constant 0 : i32
    return %c0_i32, %c0_i32_0 : i32, i32
  }
  func.func @transform_8(%arg0: i32) -> (i32, i32) {
    %c0_i32 = arith.constant 0 : i32
    %c0_i32_0 = arith.constant 0 : i32
    %c0_i32_1 = arith.constant 0 : i32
    return %c0_i32, %c0_i32_0 : i32, i32
  }
  func.func @transform_9(%arg0: i32) -> (i32, i32) {
    %c0_i32 = arith.constant 0 : i32
    %c0_i32_0 = arith.constant 0 : i32
    %c0_i32_1 = arith.constant 0 : i32
    return %c0_i32, %c0_i32_0 : i32, i32
  }
  func.func @transform_10(%arg0: i32) -> (i32, i32, i32) {
    %c0_i32 = arith.constant 0 : i32
    %c0_i32_0 = arith.constant 0 : i32
    %c0_i32_1 = arith.constant 0 : i32
    return %arg0, %c0_i32, %c0_i32_0 : i32, i32, i32
  }
}

</mosaic_0001>

<llo_original>
// kernel: tpu_custom_call.1
$region0: #{tpu_custom_call.1}
  #allocation0 [shape = 'u32[]', space=smem, size = 0x4, offset = 0x4, fixed_abs, tag = 'smem constant byte address 0x4 - core index']
  #allocation1 [shape = 'u32[144,128]{1,0:T(1,128)}', space=vmem, size = 0x12000, scoped, tag = 'internal scratch']
  %s0 = inlined_call_operand.hbm [shape: f32[2,32], index: 0, kind: input, shape index: {}]
  %s1 = inlined_call_operand.hbm [shape: f32[32,512], index: 1, kind: input, shape index: {}]
  %s2 = inlined_call_operand.vmem [shape: f32[1,512], index: 2, kind: input, shape index: {}]
  %s3 = inlined_call_operand.vmem [shape: f32[1,128], index: 3, kind: input, shape index: {}]
  %s4 = inlined_call_operand.vmem [shape: f32[1,128], index: 4, kind: input, shape index: {}]
  %s5 = inlined_call_operand.vmem [shape: f32[2,16], index: 5, kind: input, shape index: {}]
  %s6 = inlined_call_operand.hbm [shape: f32[16,512], index: 6, kind: input, shape index: {}]
  %s7 = inlined_call_operand.vmem [shape: f32[1,512], index: 7, kind: input, shape index: {}]
  %s8 = inlined_call_operand.vmem [shape: f32[1,128], index: 8, kind: input, shape index: {}]
  %s9 = inlined_call_operand.vmem [shape: f32[1,128], index: 9, kind: input, shape index: {}]
  %s10 = inlined_call_operand.hbm [shape: f32[2,8,128], index: 10, kind: output, shape index: {}]
  %s11 = sld [smem:[#allocation0]]
  $region62: #{tpu_custom_call.1} parent=0
    _
  %s13 = ssub.s32 1, %s11
  %s14 = scalar_select 0, %s13, %s11
  $region1: #{tpu_custom_call.1} parent=0
    #allocation2 [shape = 'u8[1024]{0}', space=vmem, size = 0x400, scoped, tag = 'input window, operand 0, single buffered']
    #allocation3 [shape = 's32[1]{0}', space=sflag, size = 0x4, scoped, tag = 'scoped memory for tpu_custom_call.1']
    #allocation4 [shape = 's32[1]{0}', space=sflag, size = 0x4, scoped, tag = 'scoped memory for tpu_custom_call.1']
    #allocation5 [shape = 'u8[65536]{0}', space=vmem, size = 0x10000, scoped, tag = 'input window, operand 1, single buffered']
    #allocation6 [shape = 's32[1]{0}', space=sflag, size = 0x4, scoped, tag = 'scoped memory for tpu_custom_call.1']
    #allocation7 [shape = 'u8[32768]{0}', space=vmem, size = 0x8000, scoped, tag = 'input window, operand 6, single buffered']
    #allocation8 [shape = 'u8[8192]{0}', space=vmem, size = 0x2000, scoped, tag = 'output window, operand 0, single buffered']
    %15 = vsyncpa [#allocation3], 0
    %16 = vsyncpa [#allocation6], 0
    %17 = vsyncpa [#allocation4], 0
    // Predicated region
    $region2: #{tpu_custom_call.1} parent=1 // pred_check
      _
    $region3: #{tpu_custom_call.1} parent=1 // pred_check_branch
      %19 = sbr.rel (0) target = $region5
    $region4: #{tpu_custom_call.1} parent=1 // pred_region
      %s21 = ssub.s32 32, 32
      %22 = vsyncadd [#allocation3], %s21
      %s24 = sshll.u32 [#allocation2], 4
      %s25 = int_to_ptr.vmem [resolvable:$true] %s24
      %27 = dma.hbm_to_vmem [thread:$0]  %s0, 32, %s25, [#allocation3]
    $region5: #{tpu_custom_call.1} parent=1 // pred_fallthru
      _
    // Predicated region
    $region6: #{tpu_custom_call.1} parent=1 // pred_check
      _
    $region7: #{tpu_custom_call.1} parent=1 // pred_check_branch
      %29 = sbr.rel (0) target = $region9
    $region8: #{tpu_custom_call.1} parent=1 // pred_region
      %s31 = ssub.s32 2048, 2048
      %32 = vsyncadd [#allocation6], %s31
      %s33 = sshll.u32 [#allocation5], 4
      %s34 = int_to_ptr.vmem [resolvable:$true] %s33
      %39 = dma.hbm_to_vmem [thread:$0]  %s1, 2048, %s34, [#allocation6], 512, 512, 32
    $region9: #{tpu_custom_call.1} parent=1 // pred_fallthru
      _
    // Predicated region
    $region10: #{tpu_custom_call.1} parent=1 // pred_check
      _
    $region11: #{tpu_custom_call.1} parent=1 // pred_check_branch
      %41 = sbr.rel (0) target = $region13
    $region12: #{tpu_custom_call.1} parent=1 // pred_region
      _
    $region13: #{tpu_custom_call.1} parent=1 // pred_fallthru
      _
    // Predicated region
    $region14: #{tpu_custom_call.1} parent=1 // pred_check
      _
    $region15: #{tpu_custom_call.1} parent=1 // pred_check_branch
      %43 = sbr.rel (0) target = $region17
    $region16: #{tpu_custom_call.1} parent=1 // pred_region
      _
    $region17: #{tpu_custom_call.1} parent=1 // pred_fallthru
      _
    // Predicated region
    $region18: #{tpu_custom_call.1} parent=1 // pred_check
      _
    $region19: #{tpu_custom_call.1} parent=1 // pred_check_branch
      %45 = sbr.rel (0) target = $region21
    $region20: #{tpu_custom_call.1} parent=1 // pred_region
      _
    $region21: #{tpu_custom_call.1} parent=1 // pred_fallthru
      _
    // Predicated region
    $region22: #{tpu_custom_call.1} parent=1 // pred_check
      _
    $region23: #{tpu_custom_call.1} parent=1 // pred_check_branch
      %47 = sbr.rel (0) target = $region25
    $region24: #{tpu_custom_call.1} parent=1 // pred_region
      _
    $region25: #{tpu_custom_call.1} parent=1 // pred_fallthru
      _
    // Predicated region
    $region26: #{tpu_custom_call.1} parent=1 // pred_check
      _
    $region27: #{tpu_custom_call.1} parent=1 // pred_check_branch
      %49 = sbr.rel (0) target = $region29
    $region28: #{tpu_custom_call.1} parent=1 // pred_region
      %s51 = ssub.s32 1024, 1024
      %52 = vsyncadd [#allocation6], %s51
      %s53 = sshll.u32 [#allocation7], 4
      %s54 = int_to_ptr.vmem [resolvable:$true] %s53
      %59 = dma.hbm_to_vmem [thread:$0]  %s6, 1024, %s54, [#allocation6], 512, 512, 32
    $region29: #{tpu_custom_call.1} parent=1 // pred_fallthru
      _
    // Predicated region
    $region30: #{tpu_custom_call.1} parent=1 // pred_check
      _
    $region31: #{tpu_custom_call.1} parent=1 // pred_check_branch
      %61 = sbr.rel (0) target = $region33
    $region32: #{tpu_custom_call.1} parent=1 // pred_region
      _
    $region33: #{tpu_custom_call.1} parent=1 // pred_fallthru
      _
    // Predicated region
    $region34: #{tpu_custom_call.1} parent=1 // pred_check
      _
    $region35: #{tpu_custom_call.1} parent=1 // pred_check_branch
      %63 = sbr.rel (0) target = $region37
    $region36: #{tpu_custom_call.1} parent=1 // pred_region
      _
    $region37: #{tpu_custom_call.1} parent=1 // pred_fallthru
      _
    // Predicated region
    $region38: #{tpu_custom_call.1} parent=1 // pred_check
      _
    $region39: #{tpu_custom_call.1} parent=1 // pred_check_branch
      %65 = sbr.rel (0) target = $region41
    $region40: #{tpu_custom_call.1} parent=1 // pred_region
      _
    $region41: #{tpu_custom_call.1} parent=1 // pred_fallthru
      _
    // Predicated region
    $region42: #{tpu_custom_call.1} parent=1 // pred_check
      _
    $region43: #{tpu_custom_call.1} parent=1 // pred_check_branch
      %67 = sbr.rel (0) target = $region45
    $region44: #{tpu_custom_call.1} parent=1 // pred_region
      %68 = dma.done [#allocation3], 32
    $region45: #{tpu_custom_call.1} parent=1 // pred_fallthru
      _
    // Predicated region
    $region46: #{tpu_custom_call.1} parent=1 // pred_check
      _
    $region47: #{tpu_custom_call.1} parent=1 // pred_check_branch
      %70 = sbr.rel (0) target = $region49
    $region48: #{tpu_custom_call.1} parent=1 // pred_region
      %71 = dma.done [#allocation6], 2048
    $region49: #{tpu_custom_call.1} parent=1 // pred_fallthru
      _
    // Predicated region
    $region50: #{tpu_custom_call.1} parent=1 // pred_check
      _
    $region51: #{tpu_custom_call.1} parent=1 // pred_check_branch
      %73 = sbr.rel (0) target = $region53
    $region52: #{tpu_custom_call.1} parent=1 // pred_region
      %74 = dma.done [#allocation6], 1024
    $region53: #{tpu_custom_call.1} parent=1 // pred_fallthru
      _
    %v75 = vld [vmem:[#allocation2] sm:$0x3]
    %v76 = vld [vmem:[#allocation5] sm:$0xff]
    %v77 = vld [vmem:[#allocation5 + $0x8] sm:$0xff]
    %v78 = vld [vmem:[#allocation5 + $0x10] sm:$0xff]
    %v79 = vld [vmem:[#allocation5 + $0x18] sm:$0xff]
    %v80 = vld [vmem:[#allocation5 + $0x20] sm:$0xff]
    %v81 = vld [vmem:[#allocation5 + $0x28] sm:$0xff]
    %v82 = vld [vmem:[#allocation5 + $0x30] sm:$0xff]
    %v83 = vld [vmem:[#allocation5 + $0x38] sm:$0xff]
    %v84 = vld [vmem:[#allocation5 + $0x40] sm:$0xff]
    %v85 = vld [vmem:[#allocation5 + $0x48] sm:$0xff]
    %v86 = vld [vmem:[#allocation5 + $0x50] sm:$0xff]
    %v87 = vld [vmem:[#allocation5 + $0x58] sm:$0xff]
    %v88 = vld [vmem:[#allocation5 + $0x60] sm:$0xff]
    %v89 = vld [vmem:[#allocation5 + $0x68] sm:$0xff]
    %v90 = vld [vmem:[#allocation5 + $0x70] sm:$0xff]
    %v91 = vld [vmem:[#allocation5 + $0x78] sm:$0xff]
    %v92 = vld [vmem:[%s2] sm:$0xf]
    %v94 = vlaneseq
    %v95 = vshrl.u32 %v94, 7
    %v96 = vsub.s32 0, %v95
    %v97 = vrot.slane %v92, %v96
    %v98 = vlaneseq
    %v99 = vshrl.u32 %v98, 7
    %v100 = vsub.s32 1, %v99
    %v101 = vrot.slane %v92, %v100
    %v102 = vlaneseq
    %v103 = vshrl.u32 %v102, 7
    %v104 = vsub.s32 2, %v103
    %v105 = vrot.slane %v92, %v104
    %v106 = vlaneseq
    %v107 = vshrl.u32 %v106, 7
    %v108 = vsub.s32 3, %v107
    %v109 = vrot.slane %v92, %v108
    %vm114 = vcmask 261120
    %v116 = vsel %vm114, %v75, 0
    %118 = vmatprep.subr.mxu0 %v77
    %119 = vmatpush1.msra.mxu0 %v76
    %120 = vmatprep.subr.mxu0 %v81
    %121 = vmatpush1.msra.mxu0 %v80
    %122 = vmatprep.subr.mxu0 %v85
    %123 = vmatpush1.msra.mxu0 %v84
    %124 = vmatprep.subr.mxu0 %v89
    %125 = vmatpush1.msra.mxu0 %v88
    %126 = vmatprep.subr.mxu0 0.0
    %127 = vmatpush1.msra.mxu0 0.0
    %128 = vmatprep.subr.mxu0 0.0
    %129 = vmatpush1.msra.mxu0 0.0
    %130 = vmatprep.subr.mxu0 0.0
    %131 = vmatpush1.msra.mxu0 0.0
    %132 = vmatprep.subr.mxu0 0.0
    %133 = vmatpush1.msra.mxu0 0.0
    %134 = vmatprep.subr.mxu0 0.0
    %135 = vmatpush1.msra.mxu0 0.0
    %136 = vmatprep.subr.mxu0 0.0
    %137 = vmatpush1.msra.mxu0 0.0
    %138 = vmatprep.subr.mxu0 0.0
    %139 = vmatpush1.msra.mxu0 0.0
    %140 = vmatprep.subr.mxu0 0.0
    %141 = vmatpush1.msra.mxu0 0.0
    %142 = vmatprep.subr.mxu0 0.0
    %143 = vmatpush1.msra.mxu0 0.0
    %144 = vmatprep.subr.mxu0 0.0
    %145 = vmatpush1.msra.mxu0 0.0
    %146 = vmatprep.subr.mxu0 0.0
    %147 = vmatpush1.msra.mxu0 0.0
    %148 = vmatprep.subr.mxu0 0.0
    %149 = vmatpush1.msra.mxu0 0.0
    %150 = vmatprep.subr.mxu0 0.0
    %151 = vmatpush1.msra.mxu0 0.0
    %152 = vmatprep.subr.mxu0 0.0
    %153 = vmatpush1.msra.mxu0 0.0
    %154 = vmatprep.subr.mxu0 0.0
    %155 = vmatpush1.msra.mxu0 0.0
    %156 = vmatprep.subr.mxu0 0.0
    %157 = vmatpush1.msra.mxu0 0.0
    %158 = vmatprep.subr.mxu0 0.0
    %159 = vmatpush1.msra.mxu0 0.0
    %160 = vmatprep.subr.mxu0 0.0
    %161 = vmatpush1.msra.mxu0 0.0
    %162 = vmatprep.subr.mxu0 0.0
    %163 = vmatpush1.msra.mxu0 0.0
    %164 = vmatprep.subr.mxu0 0.0
    %165 = vmatpush1.msra.mxu0 0.0
    %166 = vmatprep.subr.mxu0 0.0
    %167 = vmatpush1.msra.mxu0 0.0
    %168 = vmatprep.subr.mxu0 0.0
    %169 = vmatpush1.msra.mxu0 0.0
    %170 = vmatprep.subr.mxu0 0.0
    %171 = vmatpush1.msra.mxu0 0.0
    %172 = vmatprep.subr.mxu0 0.0
    %173 = vmatpush1.msra.mxu0 0.0
    %174 = vmatprep.subr.mxu0 0.0
    %175 = vmatpush1.msra.mxu0 0.0
    %176 = vmatprep.subr.mxu0 0.0
    %177 = vmatpush1.msra.mxu0 0.0
    %178 = vmatprep.subr.mxu0 0.0
    %179 = vmatpush1.msra.mxu0 0.0
    %180 = vmatprep.subr.mxu0 0.0
    %181 = vmatpush1.msra.mxu0 0.0
    %182 = vmatprep.mubr.f32.mxu0 0.0
    %183 = vmatmul.mubr.f32.gmra.mrb[0].mxu0 %v116
    %v184 = vpop.f32.mrb[0].mxu0
    %v185 = vadd.f32 %v97, %v184
    %v186 = vpop.f32.mrb[0].mxu0
    %v187 = vadd.f32 %v101, %v186
    %188 = vdwg.mxu0
    %189 = vmatprep.subr.mxu0 %v79
    %190 = vmatpush1.msra.mxu0 %v78
    %191 = vmatprep.subr.mxu0 %v83
    %192 = vmatpush1.msra.mxu0 %v82
    %193 = vmatprep.subr.mxu0 %v87
    %194 = vmatpush1.msra.mxu0 %v86
    %195 = vmatprep.subr.mxu0 %v91
    %196 = vmatpush1.msra.mxu0 %v90
    %197 = vmatprep.subr.mxu0 0.0
    %198 = vmatpush1.msra.mxu0 0.0
    %199 = vmatprep.subr.mxu0 0.0
    %200 = vmatpush1.msra.mxu0 0.0
    %201 = vmatprep.subr.mxu0 0.0
    %202 = vmatpush1.msra.mxu0 0.0
    %203 = vmatprep.subr.mxu0 0.0
    %204 = vmatpush1.msra.mxu0 0.0
    %205 = vmatprep.subr.mxu0 0.0
    %206 = vmatpush1.msra.mxu0 0.0
    %207 = vmatprep.subr.mxu0 0.0
    %208 = vmatpush1.msra.mxu0 0.0
    %209 = vmatprep.subr.mxu0 0.0
    %210 = vmatpush1.msra.mxu0 0.0
    %211 = vmatprep.subr.mxu0 0.0
    %212 = vmatpush1.msra.mxu0 0.0
    %213 = vmatprep.subr.mxu0 0.0
    %214 = vmatpush1.msra.mxu0 0.0
    %215 = vmatprep.subr.mxu0 0.0
    %216 = vmatpush1.msra.mxu0 0.0
    %217 = vmatprep.subr.mxu0 0.0
    %218 = vmatpush1.msra.mxu0 0.0
    %219 = vmatprep.subr.mxu0 0.0
    %220 = vmatpush1.msra.mxu0 0.0
    %221 = vmatprep.subr.mxu0 0.0
    %222 = vmatpush1.msra.mxu0 0.0
    %223 = vmatprep.subr.mxu0 0.0
    %224 = vmatpush1.msra.mxu0 0.0
    %225 = vmatprep.subr.mxu0 0.0
    %226 = vmatpush1.msra.mxu0 0.0
    %227 = vmatprep.subr.mxu0 0.0
    %228 = vmatpush1.msra.mxu0 0.0
    %229 = vmatprep.subr.mxu0 0.0
    %230 = vmatpush1.msra.mxu0 0.0
    %231 = vmatprep.subr.mxu0 0.0
    %232 = vmatpush1.msra.mxu0 0.0
    %233 = vmatprep.subr.mxu0 0.0
    %234 = vmatpush1.msra.mxu0 0.0
    %235 = vmatprep.subr.mxu0 0.0
    %236 = vmatpush1.msra.mxu0 0.0
    %237 = vmatprep.subr.mxu0 0.0
    %238 = vmatpush1.msra.mxu0 0.0
    %239 = vmatprep.subr.mxu0 0.0
    %240 = vmatpush1.msra.mxu0 0.0
    %241 = vmatprep.subr.mxu0 0.0
    %242 = vmatpush1.msra.mxu0 0.0
    %243 = vmatprep.subr.mxu0 0.0
    %244 = vmatpush1.msra.mxu0 0.0
    %245 = vmatprep.subr.mxu0 0.0
    %246 = vmatpush1.msra.mxu0 0.0
    %247 = vmatprep.subr.mxu0 0.0
    %248 = vmatpush1.msra.mxu0 0.0
    %249 = vmatprep.subr.mxu0 0.0
    %250 = vmatpush1.msra.mxu0 0.0
    %251 = vmatprep.subr.mxu0 0.0
    %252 = vmatpush1.msra.mxu0 0.0
    %253 = vmatprep.mubr.f32.mxu0 0.0
    %254 = vmatmul.mubr.f32.gmra.mrb[0].mxu0 %v116
    %v255 = vpop.f32.mrb[0].mxu0
    %v256 = vadd.f32 %v105, %v255
    %v257 = vpop.f32.mrb[0].mxu0
    %v258 = vadd.f32 %v109, %v257
    %259 = vdwg.mxu0
    %v260 = vld [vmem:[%s3] sm:$0x1]
    %v261 = vld [vmem:[%s4] sm:$0x1]
    %vm262 = vcmask 1041408
    %v263 = vsel %vm262, %v185, 0.0
    %264 = vadd.xlane.f32.xlu0 %v263
    %v265 = vpop.xlane.xlu0 %264
    %v266 = vrcp.pop 128.0
    %v267 = vmul.f32 %v265, %v266
    %v268 = vsub.f32 %v185, %v267
    %v269 = vmul.f32 %v268, %v268
    %v270 = vsel %vm262, %v269, 0.0
    %271 = vadd.xlane.f32.xlu0 %v270
    %v272 = vpop.xlane.xlu0 %271
    %v273 = vmul.f32 %v272, %v266
    %v274 = vadd.f32 %v273, 1e-05
    %v275 = vrsqrt.pop %v274
    %v276 = vmul.f32 %v268, %v275
    %v278 = vlaneseq
    %v279 = vshrl.u32 %v278, 7
    %v280 = vsub.s32 0, %v279
    %v281 = vrot.slane %v260, %v280
    %v283 = vmul.f32 %v276, %v281
    %v285 = vlaneseq
    %v286 = vshrl.u32 %v285, 7
    %v287 = vsub.s32 0, %v286
    %v288 = vrot.slane %v261, %v287
    %v290 = vadd.f32 %v283, %v288
    %v293 = vunpack.c.l.s4 1966171168
    %v294 = vunpack.c.0.s8 %v293
    %v295 = vlaneseq
    %v296 = vshrl.u32 %v295, 7
    %v297 = vsub.s32 %v294, %v296
    %v298 = vrot.slane %v290, %v297
    %v299 = vcombine.high %v298, %v298
    %v301 = vunpack.c.l.s4 1966171168
    %v302 = vunpack.c.0.s8 %v301
    %v303 = vlaneseq
    %v304 = vshrl.u32 %v303, 7
    %v305 = vsub.s32 %v302, %v304
    %v306 = vrot.slane %v298, %v305
    %v308 = vunpack.c.l.s4 1966171168
    %v309 = vunpack.c.0.s8 %v308
    %v310 = vlaneseq
    %v311 = vshrl.u32 %v310, 7
    %v312 = vsub.s32 %v309, %v311
    %v313 = vrot.slane %v299, %v312
    %316 = vst [vmem:[#allocation8] sm:$0x1] %v306
    %317 = vst [vmem:[#allocation8 + $0x8] sm:$0x1] %v313
    %v318 = vsel %vm262, %v187, 0.0
    %319 = vadd.xlane.f32.xlu0 %v318
    %v320 = vpop.xlane.xlu0 %319
    %v321 = vmul.f32 %v320, %v266
    %v322 = vsub.f32 %v187, %v321
    %v323 = vmul.f32 %v322, %v322
    %v324 = vsel %vm262, %v323, 0.0
    %325 = vadd.xlane.f32.xlu0 %v324
    %v326 = vpop.xlane.xlu0 %325
    %v327 = vmul.f32 %v326, %v266
    %v328 = vadd.f32 %v327, 1e-05
    %v329 = vrsqrt.pop %v328
    %v330 = vmul.f32 %v322, %v329
    %v331 = vmul.f32 %v330, %v281
    %v332 = vadd.f32 %v331, %v288
    %v335 = vunpack.c.l.s4 1966171168
    %v336 = vunpack.c.0.s8 %v335
    %v337 = vlaneseq
    %v338 = vshrl.u32 %v337, 7
    %v339 = vsub.s32 %v336, %v338
    %v340 = vrot.slane %v332, %v339
    %v341 = vcombine.high %v340, %v340
    %v343 = vunpack.c.l.s4 1966171168
    %v344 = vunpack.c.0.s8 %v343
    %v345 = vlaneseq
    %v346 = vshrl.u32 %v345, 7
    %v347 = vsub.s32 %v344, %v346
    %v348 = vrot.slane %v340, %v347
    %v350 = vunpack.c.l.s4 1966171168
    %v351 = vunpack.c.0.s8 %v350
    %v352 = vlaneseq
    %v353 = vshrl.u32 %v352, 7
    %v354 = vsub.s32 %v351, %v353
    %v355 = vrot.slane %v341, %v354
    %358 = vst [vmem:[#allocation8 + $0x1] sm:$0x1] %v348
    %359 = vst [vmem:[#allocation8 + $0x9] sm:$0x1] %v355
    %v360 = vsel %vm262, %v256, 0.0
    %361 = vadd.xlane.f32.xlu0 %v360
    %v362 = vpop.xlane.xlu0 %361
    %v363 = vmul.f32 %v362, %v266
    %v364 = vsub.f32 %v256, %v363
    %v365 = vmul.f32 %v364, %v364
    %v366 = vsel %vm262, %v365, 0.0
    %367 = vadd.xlane.f32.xlu0 %v366
    %v368 = vpop.xlane.xlu0 %367
    %v369 = vmul.f32 %v368, %v266
    %v370 = vadd.f32 %v369, 1e-05
    %v371 = vrsqrt.pop %v370
    %v372 = vmul.f32 %v364, %v371
    %v373 = vmul.f32 %v372, %v281
    %v374 = vadd.f32 %v373, %v288
    %v377 = vunpack.c.l.s4 1966171168
    %v378 = vunpack.c.0.s8 %v377
    %v379 = vlaneseq
    %v380 = vshrl.u32 %v379, 7
    %v381 = vsub.s32 %v378, %v380
    %v382 = vrot.slane %v374, %v381
    %v383 = vcombine.high %v382, %v382
    %v385 = vunpack.c.l.s4 1966171168
    %v386 = vunpack.c.0.s8 %v385
    %v387 = vlaneseq
    %v388 = vshrl.u32 %v387, 7
    %v389 = vsub.s32 %v386, %v388
    %v390 = vrot.slane %v382, %v389
    %v392 = vunpack.c.l.s4 1966171168
    %v393 = vunpack.c.0.s8 %v392
    %v394 = vlaneseq
    %v395 = vshrl.u32 %v394, 7
    %v396 = vsub.s32 %v393, %v395
    %v397 = vrot.slane %v383, %v396
    %400 = vst [vmem:[#allocation8 + $0x2] sm:$0x1] %v390
    %401 = vst [vmem:[#allocation8 + $0xa] sm:$0x1] %v397
    %v402 = vsel %vm262, %v258, 0.0
    %403 = vadd.xlane.f32.xlu0 %v402
    %v404 = vpop.xlane.xlu0 %403
    %v405 = vmul.f32 %v404, %v266
    %v406 = vsub.f32 %v258, %v405
    %v407 = vmul.f32 %v406, %v406
    %v408 = vsel %vm262, %v407, 0.0
    %409 = vadd.xlane.f32.xlu0 %v408
    %v410 = vpop.xlane.xlu0 %409
    %v411 = vmul.f32 %v410, %v266
    %v412 = vadd.f32 %v411, 1e-05
    %v413 = vrsqrt.pop %v412
    %v414 = vmul.f32 %v406, %v413
    %v415 = vmul.f32 %v414, %v281
    %v416 = vadd.f32 %v415, %v288
    %v419 = vunpack.c.l.s4 1966171168
    %v420 = vunpack.c.0.s8 %v419
    %v421 = vlaneseq
    %v422 = vshrl.u32 %v421, 7
    %v423 = vsub.s32 %v420, %v422
    %v424 = vrot.slane %v416, %v423
    %v425 = vcombine.high %v424, %v424
    %v427 = vunpack.c.l.s4 1966171168
    %v428 = vunpack.c.0.s8 %v427
    %v429 = vlaneseq
    %v430 = vshrl.u32 %v429, 7
    %v431 = vsub.s32 %v428, %v430
    %v432 = vrot.slane %v424, %v431
    %v434 = vunpack.c.l.s4 1966171168
    %v435 = vunpack.c.0.s8 %v434
    %v436 = vlaneseq
    %v437 = vshrl.u32 %v436, 7
    %v438 = vsub.s32 %v435, %v437
    %v439 = vrot.slane %v425, %v438
    %442 = vst [vmem:[#allocation8 + $0x3] sm:$0x1] %v432
    %443 = vst [vmem:[#allocation8 + $0xb] sm:$0x1] %v439
    %v444 = vld [vmem:[%s5] sm:$0x3]
    %v445 = vld [vmem:[#allocation7] sm:$0xff]
    %v446 = vld [vmem:[#allocation7 + $0x8] sm:$0xff]
    %v447 = vld [vmem:[#allocation7 + $0x10] sm:$0xff]
    %v448 = vld [vmem:[#allocation7 + $0x18] sm:$0xff]
    %v449 = vld [vmem:[#allocation7 + $0x20] sm:$0xff]
    %v450 = vld [vmem:[#allocation7 + $0x28] sm:$0xff]
    %v451 = vld [vmem:[#allocation7 + $0x30] sm:$0xff]
    %v452 = vld [vmem:[#allocation7 + $0x38] sm:$0xff]
    %v453 = vld [vmem:[%s7] sm:$0xf]
    %v455 = vlaneseq
    %v456 = vshrl.u32 %v455, 7
    %v457 = vsub.s32 0, %v456
    %v458 = vrot.slane %v453, %v457
    %v459 = vlaneseq
    %v460 = vshrl.u32 %v459, 7
    %v461 = vsub.s32 1, %v460
    %v462 = vrot.slane %v453, %v461
    %v463 = vlaneseq
    %v464 = vshrl.u32 %v463, 7
    %v465 = vsub.s32 2, %v464
    %v466 = vrot.slane %v453, %v465
    %v467 = vlaneseq
    %v468 = vshrl.u32 %v467, 7
    %v469 = vsub.s32 3, %v468
    %v470 = vrot.slane %v453, %v469
    %vm475 = vcmask 130048
    %v477 = vsel %vm475, %v444, 0
    %479 = vmatprep.subr.mxu0 %v446
    %480 = vmatpush1.msra.mxu0 %v445
    %481 = vmatprep.subr.mxu0 %v450
    %482 = vmatpush1.msra.mxu0 %v449
    %483 = vmatprep.subr.mxu0 0.0
    %484 = vmatpush1.msra.mxu0 0.0
    %485 = vmatprep.subr.mxu0 0.0
    %486 = vmatpush1.msra.mxu0 0.0
    %487 = vmatprep.subr.mxu0 0.0
    %488 = vmatpush1.msra.mxu0 0.0
    %489 = vmatprep.subr.mxu0 0.0
    %490 = vmatpush1.msra.mxu0 0.0
    %491 = vmatprep.subr.mxu0 0.0
    %492 = vmatpush1.msra.mxu0 0.0
    %493 = vmatprep.subr.mxu0 0.0
    %494 = vmatpush1.msra.mxu0 0.0
    %495 = vmatprep.subr.mxu0 0.0
    %496 = vmatpush1.msra.mxu0 0.0
    %497 = vmatprep.subr.mxu0 0.0
    %498 = vmatpush1.msra.mxu0 0.0
    %499 = vmatprep.subr.mxu0 0.0
    %500 = vmatpush1.msra.mxu0 0.0
    %501 = vmatprep.subr.mxu0 0.0
    %502 = vmatpush1.msra.mxu0 0.0
    %503 = vmatprep.subr.mxu0 0.0
    %504 = vmatpush1.msra.mxu0 0.0
    %505 = vmatprep.subr.mxu0 0.0
    %506 = vmatpush1.msra.mxu0 0.0
    %507 = vmatprep.subr.mxu0 0.0
    %508 = vmatpush1.msra.mxu0 0.0
    %509 = vmatprep.subr.mxu0 0.0
    %510 = vmatpush1.msra.mxu0 0.0
    %511 = vmatprep.subr.mxu0 0.0
    %512 = vmatpush1.msra.mxu0 0.0
    %513 = vmatprep.subr.mxu0 0.0
    %514 = vmatpush1.msra.mxu0 0.0
    %515 = vmatprep.subr.mxu0 0.0
    %516 = vmatpush1.msra.mxu0 0.0
    %517 = vmatprep.subr.mxu0 0.0
    %518 = vmatpush1.msra.mxu0 0.0
    %519 = vmatprep.subr.mxu0 0.0
    %520 = vmatpush1.msra.mxu0 0.0
    %521 = vmatprep.subr.mxu0 0.0
    %522 = vmatpush1.msra.mxu0 0.0
    %523 = vmatprep.subr.mxu0 0.0
    %524 = vmatpush1.msra.mxu0 0.0
    %525 = vmatprep.subr.mxu0 0.0
    %526 = vmatpush1.msra.mxu0 0.0
    %527 = vmatprep.subr.mxu0 0.0
    %528 = vmatpush1.msra.mxu0 0.0
    %529 = vmatprep.subr.mxu0 0.0
    %530 = vmatpush1.msra.mxu0 0.0
    %531 = vmatprep.subr.mxu0 0.0
    %532 = vmatpush1.msra.mxu0 0.0
    %533 = vmatprep.subr.mxu0 0.0
    %534 = vmatpush1.msra.mxu0 0.0
    %535 = vmatprep.subr.mxu0 0.0
    %536 = vmatpush1.msra.mxu0 0.0
    %537 = vmatprep.subr.mxu0 0.0
    %538 = vmatpush1.msra.mxu0 0.0
    %539 = vmatprep.subr.mxu0 0.0
    %540 = vmatpush1.msra.mxu0 0.0
    %541 = vmatprep.subr.mxu0 0.0
    %542 = vmatpush1.msra.mxu0 0.0
    %543 = vmatprep.mubr.f32.mxu0 0.0
    %544 = vmatmul.mubr.f32.gmra.mrb[0].mxu0 %v477
    %v545 = vpop.f32.mrb[0].mxu0
    %v546 = vadd.f32 %v458, %v545
    %v547 = vpop.f32.mrb[0].mxu0
    %v548 = vadd.f32 %v462, %v547
    %549 = vdwg.mxu0
    %550 = vmatprep.subr.mxu0 %v448
    %551 = vmatpush1.msra.mxu0 %v447
    %552 = vmatprep.subr.mxu0 %v452
    %553 = vmatpush1.msra.mxu0 %v451
    %554 = vmatprep.subr.mxu0 0.0
    %555 = vmatpush1.msra.mxu0 0.0
    %556 = vmatprep.subr.mxu0 0.0
    %557 = vmatpush1.msra.mxu0 0.0
    %558 = vmatprep.subr.mxu0 0.0
    %559 = vmatpush1.msra.mxu0 0.0
    %560 = vmatprep.subr.mxu0 0.0
    %561 = vmatpush1.msra.mxu0 0.0
    %562 = vmatprep.subr.mxu0 0.0
    %563 = vmatpush1.msra.mxu0 0.0
    %564 = vmatprep.subr.mxu0 0.0
    %565 = vmatpush1.msra.mxu0 0.0
    %566 = vmatprep.subr.mxu0 0.0
    %567 = vmatpush1.msra.mxu0 0.0
    %568 = vmatprep.subr.mxu0 0.0
    %569 = vmatpush1.msra.mxu0 0.0
    %570 = vmatprep.subr.mxu0 0.0
    %571 = vmatpush1.msra.mxu0 0.0
    %572 = vmatprep.subr.mxu0 0.0
    %573 = vmatpush1.msra.mxu0 0.0
    %574 = vmatprep.subr.mxu0 0.0
    %575 = vmatpush1.msra.mxu0 0.0
    %576 = vmatprep.subr.mxu0 0.0
    %577 = vmatpush1.msra.mxu0 0.0
    %578 = vmatprep.subr.mxu0 0.0
    %579 = vmatpush1.msra.mxu0 0.0
    %580 = vmatprep.subr.mxu0 0.0
    %581 = vmatpush1.msra.mxu0 0.0
    %582 = vmatprep.subr.mxu0 0.0
    %583 = vmatpush1.msra.mxu0 0.0
    %584 = vmatprep.subr.mxu0 0.0
    %585 = vmatpush1.msra.mxu0 0.0
    %586 = vmatprep.subr.mxu0 0.0
    %587 = vmatpush1.msra.mxu0 0.0
    %588 = vmatprep.subr.mxu0 0.0
    %589 = vmatpush1.msra.mxu0 0.0
    %590 = vmatprep.subr.mxu0 0.0
    %591 = vmatpush1.msra.mxu0 0.0
    %592 = vmatprep.subr.mxu0 0.0
    %593 = vmatpush1.msra.mxu0 0.0
    %594 = vmatprep.subr.mxu0 0.0
    %595 = vmatpush1.msra.mxu0 0.0
    %596 = vmatprep.subr.mxu0 0.0
    %597 = vmatpush1.msra.mxu0 0.0
    %598 = vmatprep.subr.mxu0 0.0
    %599 = vmatpush1.msra.mxu0 0.0
    %600 = vmatprep.subr.mxu0 0.0
    %601 = vmatpush1.msra.mxu0 0.0
    %602 = vmatprep.subr.mxu0 0.0
    %603 = vmatpush1.msra.mxu0 0.0
    %604 = vmatprep.subr.mxu0 0.0
    %605 = vmatpush1.msra.mxu0 0.0
    %606 = vmatprep.subr.mxu0 0.0
    %607 = vmatpush1.msra.mxu0 0.0
    %608 = vmatprep.subr.mxu0 0.0
    %609 = vmatpush1.msra.mxu0 0.0
    %610 = vmatprep.subr.mxu0 0.0
    %611 = vmatpush1.msra.mxu0 0.0
    %612 = vmatprep.subr.mxu0 0.0
    %613 = vmatpush1.msra.mxu0 0.0
    %614 = vmatprep.mubr.f32.mxu0 0.0
    %615 = vmatmul.mubr.f32.gmra.mrb[0].mxu0 %v477
    %v616 = vpop.f32.mrb[0].mxu0
    %v617 = vadd.f32 %v466, %v616
    %v618 = vpop.f32.mrb[0].mxu0
    %v619 = vadd.f32 %v470, %v618
    %620 = vdwg.mxu0
    %v621 = vld [vmem:[%s8] sm:$0x1]
    %v622 = vld [vmem:[%s9] sm:$0x1]
    %v623 = vsel %vm262, %v546, 0.0
    %624 = vadd.xlane.f32.xlu0 %v623
    %v625 = vpop.xlane.xlu0 %624
    %v626 = vmul.f32 %v625, %v266
    %v627 = vsub.f32 %v546, %v626
    %v628 = vmul.f32 %v627, %v627
    %v629 = vsel %vm262, %v628, 0.0
    %630 = vadd.xlane.f32.xlu0 %v629
    %v631 = vpop.xlane.xlu0 %630
    %v632 = vmul.f32 %v631, %v266
    %v633 = vadd.f32 %v632, 1e-05
    %v634 = vrsqrt.pop %v633
    %v635 = vmul.f32 %v627, %v634
    %v637 = vlaneseq
    %v638 = vshrl.u32 %v637, 7
    %v639 = vsub.s32 0, %v638
    %v640 = vrot.slane %v621, %v639
    %v642 = vmul.f32 %v635, %v640
    %v644 = vlaneseq
    %v645 = vshrl.u32 %v644, 7
    %v646 = vsub.s32 0, %v645
    %v647 = vrot.slane %v622, %v646
    %v649 = vadd.f32 %v642, %v647
    %v652 = vunpack.c.l.s4 1966171168
    %v653 = vunpack.c.0.s8 %v652
    %v654 = vlaneseq
    %v655 = vshrl.u32 %v654, 7
    %v656 = vsub.s32 %v653, %v655
    %v657 = vrot.slane %v649, %v656
    %v658 = vcombine.high %v657, %v657
    %v660 = vunpack.c.l.s4 1966171168
    %v661 = vunpack.c.0.s8 %v660
    %v662 = vlaneseq
    %v663 = vshrl.u32 %v662, 7
    %v664 = vsub.s32 %v661, %v663
    %v665 = vrot.slane %v657, %v664
    %v667 = vunpack.c.l.s4 1966171168
    %v668 = vunpack.c.0.s8 %v667
    %v669 = vlaneseq
    %v670 = vshrl.u32 %v669, 7
    %v671 = vsub.s32 %v668, %v670
    %v672 = vrot.slane %v658, %v671
    %675 = vst [vmem:[#allocation8 + $0x4] sm:$0x1] %v665
    %676 = vst [vmem:[#allocation8 + $0xc] sm:$0x1] %v672
    %v677 = vsel %vm262, %v548, 0.0
    %678 = vadd.xlane.f32.xlu0 %v677
    %v679 = vpop.xlane.xlu0 %678
    %v680 = vmul.f32 %v679, %v266
    %v681 = vsub.f32 %v548, %v680
    %v682 = vmul.f32 %v681, %v681
    %v683 = vsel %vm262, %v682, 0.0
    %684 = vadd.xlane.f32.xlu0 %v683
    %v685 = vpop.xlane.xlu0 %684
    %v686 = vmul.f32 %v685, %v266
    %v687 = vadd.f32 %v686, 1e-05
    %v688 = vrsqrt.pop %v687
    %v689 = vmul.f32 %v681, %v688
    %v690 = vmul.f32 %v689, %v640
    %v691 = vadd.f32 %v690, %v647
    %v694 = vunpack.c.l.s4 1966171168
    %v695 = vunpack.c.0.s8 %v694
    %v696 = vlaneseq
    %v697 = vshrl.u32 %v696, 7
    %v698 = vsub.s32 %v695, %v697
    %v699 = vrot.slane %v691, %v698
    %v700 = vcombine.high %v699, %v699
    %v702 = vunpack.c.l.s4 1966171168
    %v703 = vunpack.c.0.s8 %v702
    %v704 = vlaneseq
    %v705 = vshrl.u32 %v704, 7
    %v706 = vsub.s32 %v703, %v705
    %v707 = vrot.slane %v699, %v706
    %v709 = vunpack.c.l.s4 1966171168
    %v710 = vunpack.c.0.s8 %v709
    %v711 = vlaneseq
    %v712 = vshrl.u32 %v711, 7
    %v713 = vsub.s32 %v710, %v712
    %v714 = vrot.slane %v700, %v713
    %717 = vst [vmem:[#allocation8 + $0x5] sm:$0x1] %v707
    %718 = vst [vmem:[#allocation8 + $0xd] sm:$0x1] %v714
    %v719 = vsel %vm262, %v617, 0.0
    %720 = vadd.xlane.f32.xlu0 %v719
    %v721 = vpop.xlane.xlu0 %720
    %v722 = vmul.f32 %v721, %v266
    %v723 = vsub.f32 %v617, %v722
    %v724 = vmul.f32 %v723, %v723
    %v725 = vsel %vm262, %v724, 0.0
    %726 = vadd.xlane.f32.xlu0 %v725
    %v727 = vpop.xlane.xlu0 %726
    %v728 = vmul.f32 %v727, %v266
    %v729 = vadd.f32 %v728, 1e-05
    %v730 = vrsqrt.pop %v729
    %v731 = vmul.f32 %v723, %v730
    %v732 = vmul.f32 %v731, %v640
    %v733 = vadd.f32 %v732, %v647
    %v736 = vunpack.c.l.s4 1966171168
    %v737 = vunpack.c.0.s8 %v736
    %v738 = vlaneseq
    %v739 = vshrl.u32 %v738, 7
    %v740 = vsub.s32 %v737, %v739
    %v741 = vrot.slane %v733, %v740
    %v742 = vcombine.high %v741, %v741
    %v744 = vunpack.c.l.s4 1966171168
    %v745 = vunpack.c.0.s8 %v744
    %v746 = vlaneseq
    %v747 = vshrl.u32 %v746, 7
    %v748 = vsub.s32 %v745, %v747
    %v749 = vrot.slane %v741, %v748
    %v751 = vunpack.c.l.s4 1966171168
    %v752 = vunpack.c.0.s8 %v751
    %v753 = vlaneseq
    %v754 = vshrl.u32 %v753, 7
    %v755 = vsub.s32 %v752, %v754
    %v756 = vrot.slane %v742, %v755
    %759 = vst [vmem:[#allocation8 + $0x6] sm:$0x1] %v749
    %760 = vst [vmem:[#allocation8 + $0xe] sm:$0x1] %v756
    %v761 = vsel %vm262, %v619, 0.0
    %762 = vadd.xlane.f32.xlu0 %v761
    %v763 = vpop.xlane.xlu0 %762
    %v764 = vmul.f32 %v763, %v266
    %v765 = vsub.f32 %v619, %v764
    %v766 = vmul.f32 %v765, %v765
    %v767 = vsel %vm262, %v766, 0.0
    %768 = vadd.xlane.f32.xlu0 %v767
    %v769 = vpop.xlane.xlu0 %768
    %v770 = vmul.f32 %v769, %v266
    %v771 = vadd.f32 %v770, 1e-05
    %v772 = vrsqrt.pop %v771
    %v773 = vmul.f32 %v765, %v772
    %v774 = vmul.f32 %v773, %v640
    %v775 = vadd.f32 %v774, %v647
    %v778 = vunpack.c.l.s4 1966171168
    %v779 = vunpack.c.0.s8 %v778
    %v780 = vlaneseq
    %v781 = vshrl.u32 %v780, 7
    %v782 = vsub.s32 %v779, %v781
    %v783 = vrot.slane %v775, %v782
    %v784 = vcombine.high %v783, %v783
    %v786 = vunpack.c.l.s4 1966171168
    %v787 = vunpack.c.0.s8 %v786
    %v788 = vlaneseq
    %v789 = vshrl.u32 %v788, 7
    %v790 = vsub.s32 %v787, %v789
    %v791 = vrot.slane %v783, %v790
    %v793 = vunpack.c.l.s4 1966171168
    %v794 = vunpack.c.0.s8 %v793
    %v795 = vlaneseq
    %v796 = vshrl.u32 %v795, 7
    %v797 = vsub.s32 %v794, %v796
    %v798 = vrot.slane %v784, %v797
    %801 = vst [vmem:[#allocation8 + $0x7] sm:$0x1] %v791
    %802 = vst [vmem:[#allocation8 + $0xf] sm:$0x1] %v798
    // Predicated region
    $region54: #{tpu_custom_call.1} parent=1 // pred_check
      _
    $region55: #{tpu_custom_call.1} parent=1 // pred_check_branch
      %804 = sbr.rel (0) target = $region57
    $region56: #{tpu_custom_call.1} parent=1 // pred_region
      %s806 = ssub.s32 256, 256
      %807 = vsyncadd [#allocation4], %s806
      %s808 = sshll.u32 [#allocation8], 4
      %s809 = int_to_ptr.vmem [resolvable:$true] %s808
      %814 = dma.vmem_to_hbm [thread:$0]  %s809, 256, %s10, [#allocation4], 128, 128, 8
    $region57: #{tpu_custom_call.1} parent=1 // pred_fallthru
      _
    // Predicated region
    $region58: #{tpu_custom_call.1} parent=1 // pred_check
      _
    $region59: #{tpu_custom_call.1} parent=1 // pred_check_branch
      %816 = sbr.rel (0) target = $region61
    $region60: #{tpu_custom_call.1} parent=1 // pred_region
      %817 = dma.done [#allocation4], 256
    $region61: #{tpu_custom_call.1} parent=1 // pred_fallthru
      _
    %818 = vsyncpa [#allocation3], 1
    %819 = vsyncpa [#allocation6], 1
    %820 = vsyncpa [#allocation4], 1

</llo_original>
